<compile_context>
chip_gen: v6e
topology: v6e:2x2x1
jax: 0.10.0
libtpu: 0.0.40
codegen_flags: <defaults>
</compile_context>

<pallas_src>
import functools

import jax
import jax.numpy as jnp
from jax.experimental import pallas as pl
from jax.experimental.pallas import tpu as pltpu


def _round_up(x, m):
    return ((x + m - 1) // m) * m


def _pick_batch_tile(B, block_b):
    # Tiny batch: one full tile (block == full dim is always legal).
    if B < 16:
        return B
    # >= 2 batch tiles so both v7x TensorCores get work and the batch pipeline
    # has something to double-buffer; keep tiles <= block_b (<=256 is good for
    # v5e's single store slot) and a multiple of 8 sublanes.
    bm = min(block_b, _round_up((B + 1) // 2, 8))
    bm = max(8, (bm // 8) * 8)
    return min(bm, B)


# --------------------------------------------------------------------------
# Fused kernel:
#   relu(x@W1+b1) -> relu(.@W2+b2) -> per-action (.@W3a+b3a -> softmax -> store
#   prob slab, and Q_a = <prob, supports> via the same MXU dot).
# --------------------------------------------------------------------------
def _c51_fused_kernel(x_ref, w1_ref, b1_ref, w2_ref, b2_ref, w3_ref, b3_ref,
                      red_ref, p_ref, q_ref, *, n_actions, atoms_pad):
    # MXU matmuls in bf16, f32 accumulation; everything else in f32.
    x = x_ref[...].astype(jnp.bfloat16)
    h1 = jnp.dot(x, w1_ref[...], preferred_element_type=jnp.float32) + b1_ref[...]
    h1 = jnp.maximum(h1, 0.0).astype(jnp.bfloat16)
    h2 = jnp.dot(h1, w2_ref[...], preferred_element_type=jnp.float32) + b2_ref[...]
    h2 = jnp.maximum(h2, 0.0).astype(jnp.bfloat16)

    # red: [atoms_pad, 2]  col 0 = 1 for real atoms (softmax denominator),
    #                      col 1 = supports (zero-padded) for the Q-value.
    red = red_ref[...]

    # Small static loop -> unrolled at trace time.  atoms_pad is a multiple of
    # 128 so every slice / store below is lane-aligned (unmasked vst for p).
    for a in range(n_actions):
        lo = a * atoms_pad
        za = (jnp.dot(h2, w3_ref[:, lo:lo + atoms_pad],
                      preferred_element_type=jnp.float32)
              + b3_ref[:, lo:lo + atoms_pad])          # padded atoms: bias -1e30
        m = jnp.max(za, axis=-1, keepdims=True)        # XLU
        e = jnp.exp(za - m)                            # EUP; padded atoms -> exactly 0
        r = jnp.dot(e, red, preferred_element_type=jnp.float32)   # MXU: [bm, 2]
        inv = 1.0 / r[:, 0:1]                          # exact normalization
        p_ref[:, lo:lo + atoms_pad] = (e * inv).astype(p_ref.dtype)
        q_ref[:, a:a + 1] = (r[:, 1:2] * inv).astype(q_ref.dtype)


def c51_forward_padded(x, w1, b1, w2, b2, w3, b3, red, *, n_actions, atoms_pad,
                       block_b=256):
    """Returns (p_pad [B, n_actions*atoms_pad] f32, q [B, n_actions] f32)."""
    B, n_in = x.shape
    out_dim = n_actions * atoms_pad

    bm = _pick_batch_tile(B, block_b)
    nb = pl.cdiv(B, bm)
    # NOTE: if B % bm != 0 the padded rows of the last tile run softmax on
    # unspecified data; those rows are masked on store, so outputs are correct.

    def _resident(shape):
        # Whole (small) array as one block; constant index_map keeps it
        # resident in VMEM across grid iterations (no re-fetch).
        return pl.BlockSpec(shape, lambda i: (0,) * len(shape))

    def _nbytes(a):
        return int(a.size) * int(a.dtype.itemsize)

    resident_bytes = sum(_nbytes(a) for a in (w1, b1, w2, b2, w3, b3, red))
    tile_bytes = bm * (n_in * int(x.dtype.itemsize) + out_dim * 4 + 128 * 4)
    vmem_limit = max(32 * 1024 * 1024, 4 * (2 * resident_bytes + 4 * tile_bytes))

    kernel = functools.partial(_c51_fused_kernel,
                               n_actions=n_actions, atoms_pad=atoms_pad)
    return pl.pallas_call(
        kernel,
        out_shape=(jax.ShapeDtypeStruct((B, out_dim), jnp.float32),
                   jax.ShapeDtypeStruct((B, n_actions), jnp.float32)),
        grid_spec=pltpu.PrefetchScalarGridSpec(
            num_scalar_prefetch=0,
            grid=(nb,),
            in_specs=[
                pl.BlockSpec((bm, n_in), lambda i: (i, 0)),
                _resident(w1.shape), _resident(b1.shape),
                _resident(w2.shape), _resident(b2.shape),
                _resident(w3.shape), _resident(b3.shape),
                _resident(red.shape),
            ],
            out_specs=[pl.BlockSpec((bm, out_dim), lambda i: (i, 0)),
                       pl.BlockSpec((bm, n_actions), lambda i: (i, 0))],
        ),
        compiler_params=pltpu.CompilerParams(
            dimension_semantics=("parallel",),   # v7x: split batch tiles across TCs
            vmem_limit_bytes=int(vmem_limit)),
    )(x, w1, b1, w2, b2, w3, b3, red)


# --------------------------------------------------------------------------
# Module: parameter construction + forward / move
# --------------------------------------------------------------------------
class CategoricalDeepQN:
    def __init__(self, n_inputs, n_outputs, hidden_layer_dims,
                 n_atoms=51, V_MAX=-10, V_MIN=+10, key=None):
        assert len(hidden_layer_dims) == 2, "this kernel fuses exactly 2 hidden layers"
        self.n_atoms = n_atoms
        self.n_actions = n_outputs
        self.V_MIN = V_MIN
        self.V_MAX = V_MAX
        self.DZ = (V_MAX - V_MIN) / (n_atoms - 1)
        # linspace: exactly n_atoms support points; faithful to the module's
        # (swapped) default V_MIN/V_MAX, robust to arange float-step rounding.
        self.supports = jnp.linspace(V_MIN, V_MAX, n_atoms, dtype=jnp.float32)

        self.atoms_pad = _round_up(n_atoms, 128)       # lane-dense atom width
        h1, h2 = hidden_layer_dims
        h1p, h2p = _round_up(h1, 128), _round_up(h2, 128)   # lane-dense hidden dims

        if key is None:
            key = jax.random.PRNGKey(0)

        def linear_init(k, fan_in, fan_out):
            kw, kb = jax.random.split(k)
            bound = 1.0 / (fan_in ** 0.5)   # torch nn.Linear default init range
            w = jax.random.uniform(kw, (fan_in, fan_out), jnp.float32, -bound, bound)
            b = jax.random.uniform(kb, (1, fan_out), jnp.float32, -bound, bound)
            return w, b                     # stored as [in, out] so kernel does x @ W

        k1, k2, k3 = jax.random.split(key, 3)
        # f32 master copies (unpadded) — kept for export / the pure-JAX reference.
        self.w1, self.b1 = linear_init(k1, n_inputs, h1)
        self.w2, self.b2 = linear_init(k2, h1, h2)
        self.w3, self.b3 = linear_init(k3, h2, self.n_actions * n_atoms)

        A, P = self.n_actions, self.atoms_pad
        # Padded kernel parameters.  Padding is exact: padded hidden units get
        # zero weight/bias -> relu(0)=0; padded atoms get -1e30 bias -> exp=0.
        w1p = jnp.zeros((n_inputs, h1p), jnp.float32).at[:, :h1].set(self.w1)
        b1p = jnp.zeros((1, h1p), jnp.float32).at[:, :h1].set(self.b1)
        w2p = jnp.zeros((h1p, h2p), jnp.float32).at[:h1, :h2].set(self.w2)
        b2p = jnp.zeros((1, h2p), jnp.float32).at[:, :h2].set(self.b2)
        w3p = jnp.zeros((h2p, A, P), jnp.float32)
        w3p = w3p.at[:h2, :, :n_atoms].set(self.w3.reshape(h2, A, n_atoms))
        b3p = jnp.full((1, A, P), -1e30, jnp.float32)
        b3p = b3p.at[:, :, :n_atoms].set(self.b3.reshape(1, A, n_atoms))

        # bf16 weights (MXU native), f32 biases.
        self.w1p = w1p.astype(jnp.bfloat16)
        self.w2p = w2p.astype(jnp.bfloat16)
        self.w3p = w3p.reshape(h2p, A * P).astype(jnp.bfloat16)
        self.b1p = b1p
        self.b2p = b2p
        self.b3p = b3p.reshape(1, A * P)

        # Reduction matrix for the fused softmax-denominator / expected-value
        # MXU dot: col 0 = atom mask (ones for real atoms), col 1 = supports.
        red = jnp.zeros((P, 2), jnp.float32)
        red = red.at[:n_atoms, 0].set(1.0)
        red = red.at[:n_atoms, 1].set(self.supports)
        self.red_mat = red

    def _run(self, states):
        return c51_forward_padded(
            states, self.w1p, self.b1p, self.w2p, self.b2p,
            self.w3p, self.b3p, self.red_mat,
            n_actions=self.n_actions, atoms_pad=self.atoms_pad)

    def forward(self, states):
        B = states.shape[0]
        p_pad, _ = self._run(states)
        # Host-side slice only to match the module's [B, A, n_atoms] contract;
        # downstream consumers that can take the padded layout should use
        # forward_padded() to skip this extra HBM copy.
        return p_pad.reshape(B, self.n_actions, self.atoms_pad)[:, :, :self.n_atoms]

    def forward_padded(self, states):
        """Padded [B, A, atoms_pad] probabilities (padded atoms are exactly 0)."""
        B = states.shape[0]
        p_pad, _ = self._run(states)
        return p_pad.reshape(B, self.n_actions, self.atoms_pad)

    def move(self, states):
        B = states.shape[0]
        p_pad, actions = self._run(states)     # Q-values fused into the kernel
        prob = p_pad.reshape(B, self.n_actions, self.atoms_pad)[:, :, :self.n_atoms]
        return actions, prob


# --------------------------------------------------------------------------
# Pure-JAX reference (mirrors the kernel's bf16-weight / f32-accumulate math).
# --------------------------------------------------------------------------
def _reference_forward(net, x):
    w1 = net.w1.astype(jnp.bfloat16)
    w2 = net.w2.astype(jnp.bfloat16)
    w3 = net.w3.astype(jnp.bfloat16)
    h = jnp.maximum(jnp.dot(x.astype(jnp.bfloat16), w1,
                            preferred_element_type=jnp.float32) + net.b1, 0.0)
    h = jnp.maximum(jnp.dot(h.astype(jnp.bfloat16), w2,
                            preferred_element_type=jnp.float32) + net.b2, 0.0)
    z = jnp.dot(h.astype(jnp.bfloat16), w3,
                preferred_element_type=jnp.float32) + net.b3
    z = z.reshape(-1, net.n_actions, net.n_atoms)
    return jax.nn.softmax(z, axis=2)


if __name__ == "__main__":
    B, n_inputs, n_actions, n_atoms = 8, 32, 4, 51
    hidden = [64, 32]

    key = jax.random.PRNGKey(0)
    kx, kp = jax.random.split(key)
    states = jax.random.normal(kx, (B, n_inputs), jnp.float32)

    net = CategoricalDeepQN(n_inputs, n_actions, hidden, n_atoms=n_atoms, key=kp)

    p = jax.block_until_ready(net.forward(states))
    p_ref = _reference_forward(net, states)

    assert p.shape == (B, n_actions, n_atoms)
    assert jnp.allclose(p, p_ref, atol=2e-3, rtol=2e-3), \
        float(jnp.max(jnp.abs(p - p_ref)))
    # Exact in-kernel division -> distributions sum to 1 to f32 rounding.
    assert jnp.allclose(jnp.sum(p, axis=2), 1.0, atol=1e-3)

    actions, prob = net.move(states)
    actions = jax.block_until_ready(actions)
    assert actions.shape == (B, n_actions)
    assert prob.shape == (B, n_actions, n_atoms)
    actions_ref = jnp.sum(p_ref * net.supports, axis=2)
    assert jnp.allclose(actions, actions_ref, atol=2e-2, rtol=2e-2), \
        float(jnp.max(jnp.abs(actions - actions_ref)))

    print("KERNEL_OK")
</pallas_src>

<mosaic_0001>
module attributes {stable_mosaic.version = 11 : i64} {
  func.func @_c51_fused_kernel(%arg0: i32, %arg1: memref<8x32xf32, #tpu.memory_space<vmem>>, %arg2: memref<32x128xbf16, #tpu.memory_space<vmem>>, %arg3: memref<1x128xf32, #tpu.memory_space<vmem>>, %arg4: memref<128x128xbf16, #tpu.memory_space<vmem>>, %arg5: memref<1x128xf32, #tpu.memory_space<vmem>>, %arg6: memref<128x512xbf16, #tpu.memory_space<vmem>>, %arg7: memref<1x512xf32, #tpu.memory_space<vmem>>, %arg8: memref<128x2xf32, #tpu.memory_space<vmem>>, %arg9: memref<8x512xf32, #tpu.memory_space<vmem>>, %arg10: memref<8x4xf32, #tpu.memory_space<vmem>>) attributes {dimension_semantics = [#tpu.dimension_semantics<parallel>], iteration_bounds = array<i64: 1>, scalar_prefetch = 0 : i64, scratch_operands = 0 : i64, tpu.core_type = #tpu.core_type<tc>, window_params = [{transform_indices = @transform_0, window_bounds = array<i64: 8, 32>}, {pipeline_mode = #tpu.pipeline_mode<synchronous>, transform_indices = @transform_1, window_bounds = array<i64: 32, 128>}, {pipeline_mode = #tpu.pipeline_mode<synchronous>, transform_indices = @transform_2, window_bounds = array<i64: 1, 128>}, {pipeline_mode = #tpu.pipeline_mode<synchronous>, transform_indices = @transform_3, window_bounds = array<i64: 128, 128>}, {pipeline_mode = #tpu.pipeline_mode<synchronous>, transform_indices = @transform_4, window_bounds = array<i64: 1, 128>}, {pipeline_mode = #tpu.pipeline_mode<synchronous>, transform_indices = @transform_5, window_bounds = array<i64: 128, 512>}, {pipeline_mode = #tpu.pipeline_mode<synchronous>, transform_indices = @transform_6, window_bounds = array<i64: 1, 512>}, {pipeline_mode = #tpu.pipeline_mode<synchronous>, transform_indices = @transform_7, window_bounds = array<i64: 128, 2>}, {transform_indices = @transform_8, window_bounds = array<i64: 8, 512>}, {transform_indices = @transform_9, window_bounds = array<i64: 8, 4>}]} {
    %c0 = arith.constant 0 : index
    %c0_0 = arith.constant 0 : index
    %0 = vector.load %arg1[%c0, %c0_0] : memref<8x32xf32, #tpu.memory_space<vmem>>, vector<8x32xf32>
    %1 = arith.truncf %0 : vector<8x32xf32> to vector<8x32xbf16>
    %c0_1 = arith.constant 0 : index
    %c0_2 = arith.constant 0 : index
    %2 = vector.load %arg2[%c0_1, %c0_2] : memref<32x128xbf16, #tpu.memory_space<vmem>>, vector<32x128xbf16>
    %cst = arith.constant dense<0.000000e+00> : vector<8x128xf32>
    %3 = tpu.matmul %1, %2, %cst {dimension_numbers = #tpu.dot_dimension_numbers<[1], [0], [0], [1], [0, 0, 1, 1], [], []>} : vector<8x32xbf16>, vector<32x128xbf16>, vector<8x128xf32> -> vector<8x128xf32>
    %c0_3 = arith.constant 0 : index
    %c0_4 = arith.constant 0 : index
    %4 = vector.load %arg3[%c0_3, %c0_4] : memref<1x128xf32, #tpu.memory_space<vmem>>, vector<1x128xf32>
    %5 = vector.broadcast %4 : vector<1x128xf32> to vector<8x128xf32>
    %6 = arith.addf %3, %5 : vector<8x128xf32>
    %cst_5 = arith.constant 0.000000e+00 : f32
    %7 = vector.broadcast %cst_5 : f32 to vector<8x128xf32>
    %8 = arith.maximumf %6, %7 : vector<8x128xf32>
    %9 = arith.truncf %8 : vector<8x128xf32> to vector<8x128xbf16>
    %c0_6 = arith.constant 0 : index
    %c0_7 = arith.constant 0 : index
    %10 = vector.load %arg4[%c0_6, %c0_7] : memref<128x128xbf16, #tpu.memory_space<vmem>>, vector<128x128xbf16>
    %cst_8 = arith.constant dense<0.000000e+00> : vector<8x128xf32>
    %11 = tpu.matmul %9, %10, %cst_8 {dimension_numbers = #tpu.dot_dimension_numbers<[1], [0], [0], [1], [0, 0, 1, 1], [], []>} : vector<8x128xbf16>, vector<128x128xbf16>, vector<8x128xf32> -> vector<8x128xf32>
    %c0_9 = arith.constant 0 : index
    %c0_10 = arith.constant 0 : index
    %12 = vector.load %arg5[%c0_9, %c0_10] : memref<1x128xf32, #tpu.memory_space<vmem>>, vector<1x128xf32>
    %13 = vector.broadcast %12 : vector<1x128xf32> to vector<8x128xf32>
    %14 = arith.addf %11, %13 : vector<8x128xf32>
    %cst_11 = arith.constant 0.000000e+00 : f32
    %15 = vector.broadcast %cst_11 : f32 to vector<8x128xf32>
    %16 = arith.maximumf %14, %15 : vector<8x128xf32>
    %17 = arith.truncf %16 : vector<8x128xf32> to vector<8x128xbf16>
    %c0_12 = arith.constant 0 : index
    %c0_13 = arith.constant 0 : index
    %18 = vector.load %arg8[%c0_12, %c0_13] : memref<128x2xf32, #tpu.memory_space<vmem>>, vector<128x2xf32>
    %c0_14 = arith.constant 0 : index
    %c0_15 = arith.constant 0 : index
    %19 = vector.load %arg6[%c0_14, %c0_15] : memref<128x512xbf16, #tpu.memory_space<vmem>>, vector<128x128xbf16>
    %cst_16 = arith.constant dense<0.000000e+00> : vector<8x128xf32>
    %20 = tpu.matmul %17, %19, %cst_16 {dimension_numbers = #tpu.dot_dimension_numbers<[1], [0], [0], [1], [0, 0, 1, 1], [], []>} : vector<8x128xbf16>, vector<128x128xbf16>, vector<8x128xf32> -> vector<8x128xf32>
    %c0_17 = arith.constant 0 : index
    %c0_18 = arith.constant 0 : index
    %21 = vector.load %arg7[%c0_17, %c0_18] : memref<1x512xf32, #tpu.memory_space<vmem>>, vector<1x128xf32>
    %22 = vector.broadcast %21 : vector<1x128xf32> to vector<8x128xf32>
    %23 = arith.addf %20, %22 : vector<8x128xf32>
    %cst_19 = arith.constant dense<0xFF800000> : vector<8xf32>
    %24 = vector.multi_reduction <maximumf>, %23, %cst_19 [1] : vector<8x128xf32> to vector<8xf32>
    %25 = vector.shape_cast %24 : vector<8xf32> to vector<8x1xf32>
    %26 = vector.broadcast %25 : vector<8x1xf32> to vector<8x128xf32>
    %27 = arith.subf %23, %26 : vector<8x128xf32>
    %28 = math.exp %27 : vector<8x128xf32>
    %cst_20 = arith.constant dense<0.000000e+00> : vector<8x2xf32>
    %29 = tpu.matmul %28, %18, %cst_20 {dimension_numbers = #tpu.dot_dimension_numbers<[1], [0], [0], [1], [0, 0, 1, 1], [], []>} : vector<8x128xf32>, vector<128x2xf32>, vector<8x2xf32> -> vector<8x2xf32>
    %30 = vector.extract_strided_slice %29 {offsets = [0, 0], sizes = [8, 1], strides = [1, 1]} : vector<8x2xf32> to vector<8x1xf32>
    %cst_21 = arith.constant 1.000000e+00 : f32
    %31 = vector.broadcast %cst_21 : f32 to vector<8x1xf32>
    %32 = arith.divf %31, %30 : vector<8x1xf32>
    %33 = vector.broadcast %32 : vector<8x1xf32> to vector<8x128xf32>
    %34 = arith.mulf %28, %33 : vector<8x128xf32>
    %c0_22 = arith.constant 0 : index
    %c0_23 = arith.constant 0 : index
    %35 = vector.load %arg9[%c0_22, %c0_23] : memref<8x512xf32, #tpu.memory_space<vmem>>, vector<8x128xf32>
    tpu.vector_store %arg9[%c0_22, %c0_23], %34 {strides = array<i32>} : memref<8x512xf32, #tpu.memory_space<vmem>>, vector<8x128xf32>,
    %36 = vector.extract_strided_slice %29 {offsets = [0, 1], sizes = [8, 1], strides = [1, 1]} : vector<8x2xf32> to vector<8x1xf32>
    %37 = arith.mulf %36, %32 : vector<8x1xf32>
    %c0_24 = arith.constant 0 : index
    %c0_25 = arith.constant 0 : index
    %38 = vector.load %arg10[%c0_24, %c0_25] : memref<8x4xf32, #tpu.memory_space<vmem>>, vector<8x1xf32>
    tpu.vector_store %arg10[%c0_24, %c0_25], %37 {strides = array<i32>} : memref<8x4xf32, #tpu.memory_space<vmem>>, vector<8x1xf32>,
    %c0_26 = arith.constant 0 : index
    %c128 = arith.constant 128 : index
    %39 = vector.load %arg6[%c0_26, %c128] : memref<128x512xbf16, #tpu.memory_space<vmem>>, vector<128x128xbf16>
    %cst_27 = arith.constant dense<0.000000e+00> : vector<8x128xf32>
    %40 = tpu.matmul %17, %39, %cst_27 {dimension_numbers = #tpu.dot_dimension_numbers<[1], [0], [0], [1], [0, 0, 1, 1], [], []>} : vector<8x128xbf16>, vector<128x128xbf16>, vector<8x128xf32> -> vector<8x128xf32>
    %c0_28 = arith.constant 0 : index
    %c128_29 = arith.constant 128 : index
    %41 = vector.load %arg7[%c0_28, %c128_29] : memref<1x512xf32, #tpu.memory_space<vmem>>, vector<1x128xf32>
    %42 = vector.broadcast %41 : vector<1x128xf32> to vector<8x128xf32>
    %43 = arith.addf %40, %42 : vector<8x128xf32>
    %cst_30 = arith.constant dense<0xFF800000> : vector<8xf32>
    %44 = vector.multi_reduction <maximumf>, %43, %cst_30 [1] : vector<8x128xf32> to vector<8xf32>
    %45 = vector.shape_cast %44 : vector<8xf32> to vector<8x1xf32>
    %46 = vector.broadcast %45 : vector<8x1xf32> to vector<8x128xf32>
    %47 = arith.subf %43, %46 : vector<8x128xf32>
    %48 = math.exp %47 : vector<8x128xf32>
    %cst_31 = arith.constant dense<0.000000e+00> : vector<8x2xf32>
    %49 = tpu.matmul %48, %18, %cst_31 {dimension_numbers = #tpu.dot_dimension_numbers<[1], [0], [0], [1], [0, 0, 1, 1], [], []>} : vector<8x128xf32>, vector<128x2xf32>, vector<8x2xf32> -> vector<8x2xf32>
    %50 = vector.extract_strided_slice %49 {offsets = [0, 0], sizes = [8, 1], strides = [1, 1]} : vector<8x2xf32> to vector<8x1xf32>
    %cst_32 = arith.constant 1.000000e+00 : f32
    %51 = vector.broadcast %cst_32 : f32 to vector<8x1xf32>
    %52 = arith.divf %51, %50 : vector<8x1xf32>
    %53 = vector.broadcast %52 : vector<8x1xf32> to vector<8x128xf32>
    %54 = arith.mulf %48, %53 : vector<8x128xf32>
    %c0_33 = arith.constant 0 : index
    %c128_34 = arith.constant 128 : index
    %55 = vector.load %arg9[%c0_33, %c128_34] : memref<8x512xf32, #tpu.memory_space<vmem>>, vector<8x128xf32>
    tpu.vector_store %arg9[%c0_33, %c128_34], %54 {strides = array<i32>} : memref<8x512xf32, #tpu.memory_space<vmem>>, vector<8x128xf32>,
    %56 = vector.extract_strided_slice %49 {offsets = [0, 1], sizes = [8, 1], strides = [1, 1]} : vector<8x2xf32> to vector<8x1xf32>
    %57 = arith.mulf %56, %52 : vector<8x1xf32>
    %c0_35 = arith.constant 0 : index
    %c1 = arith.constant 1 : index
    %58 = vector.load %arg10[%c0_35, %c1] : memref<8x4xf32, #tpu.memory_space<vmem>>, vector<8x1xf32>
    tpu.vector_store %arg10[%c0_35, %c1], %57 {strides = array<i32>} : memref<8x4xf32, #tpu.memory_space<vmem>>, vector<8x1xf32>,
    %c0_36 = arith.constant 0 : index
    %c256 = arith.constant 256 : index
    %59 = vector.load %arg6[%c0_36, %c256] : memref<128x512xbf16, #tpu.memory_space<vmem>>, vector<128x128xbf16>
    %cst_37 = arith.constant dense<0.000000e+00> : vector<8x128xf32>
    %60 = tpu.matmul %17, %59, %cst_37 {dimension_numbers = #tpu.dot_dimension_numbers<[1], [0], [0], [1], [0, 0, 1, 1], [], []>} : vector<8x128xbf16>, vector<128x128xbf16>, vector<8x128xf32> -> vector<8x128xf32>
    %c0_38 = arith.constant 0 : index
    %c256_39 = arith.constant 256 : index
    %61 = vector.load %arg7[%c0_38, %c256_39] : memref<1x512xf32, #tpu.memory_space<vmem>>, vector<1x128xf32>
    %62 = vector.broadcast %61 : vector<1x128xf32> to vector<8x128xf32>
    %63 = arith.addf %60, %62 : vector<8x128xf32>
    %cst_40 = arith.constant dense<0xFF800000> : vector<8xf32>
    %64 = vector.multi_reduction <maximumf>, %63, %cst_40 [1] : vector<8x128xf32> to vector<8xf32>
    %65 = vector.shape_cast %64 : vector<8xf32> to vector<8x1xf32>
    %66 = vector.broadcast %65 : vector<8x1xf32> to vector<8x128xf32>
    %67 = arith.subf %63, %66 : vector<8x128xf32>
    %68 = math.exp %67 : vector<8x128xf32>
    %cst_41 = arith.constant dense<0.000000e+00> : vector<8x2xf32>
    %69 = tpu.matmul %68, %18, %cst_41 {dimension_numbers = #tpu.dot_dimension_numbers<[1], [0], [0], [1], [0, 0, 1, 1], [], []>} : vector<8x128xf32>, vector<128x2xf32>, vector<8x2xf32> -> vector<8x2xf32>
    %70 = vector.extract_strided_slice %69 {offsets = [0, 0], sizes = [8, 1], strides = [1, 1]} : vector<8x2xf32> to vector<8x1xf32>
    %cst_42 = arith.constant 1.000000e+00 : f32
    %71 = vector.broadcast %cst_42 : f32 to vector<8x1xf32>
    %72 = arith.divf %71, %70 : vector<8x1xf32>
    %73 = vector.broadcast %72 : vector<8x1xf32> to vector<8x128xf32>
    %74 = arith.mulf %68, %73 : vector<8x128xf32>
    %c0_43 = arith.constant 0 : index
    %c256_44 = arith.constant 256 : index
    %75 = vector.load %arg9[%c0_43, %c256_44] : memref<8x512xf32, #tpu.memory_space<vmem>>, vector<8x128xf32>
    tpu.vector_store %arg9[%c0_43, %c256_44], %74 {strides = array<i32>} : memref<8x512xf32, #tpu.memory_space<vmem>>, vector<8x128xf32>,
    %76 = vector.extract_strided_slice %69 {offsets = [0, 1], sizes = [8, 1], strides = [1, 1]} : vector<8x2xf32> to vector<8x1xf32>
    %77 = arith.mulf %76, %72 : vector<8x1xf32>
    %c0_45 = arith.constant 0 : index
    %c2 = arith.constant 2 : index
    %78 = vector.load %arg10[%c0_45, %c2] : memref<8x4xf32, #tpu.memory_space<vmem>>, vector<8x1xf32>
    tpu.vector_store %arg10[%c0_45, %c2], %77 {strides = array<i32>} : memref<8x4xf32, #tpu.memory_space<vmem>>, vector<8x1xf32>,
    %c0_46 = arith.constant 0 : index
    %c384 = arith.constant 384 : index
    %79 = vector.load %arg6[%c0_46, %c384] : memref<128x512xbf16, #tpu.memory_space<vmem>>, vector<128x128xbf16>
    %cst_47 = arith.constant dense<0.000000e+00> : vector<8x128xf32>
    %80 = tpu.matmul %17, %79, %cst_47 {dimension_numbers = #tpu.dot_dimension_numbers<[1], [0], [0], [1], [0, 0, 1, 1], [], []>} : vector<8x128xbf16>, vector<128x128xbf16>, vector<8x128xf32> -> vector<8x128xf32>
    %c0_48 = arith.constant 0 : index
    %c384_49 = arith.constant 384 : index
    %81 = vector.load %arg7[%c0_48, %c384_49] : memref<1x512xf32, #tpu.memory_space<vmem>>, vector<1x128xf32>
    %82 = vector.broadcast %81 : vector<1x128xf32> to vector<8x128xf32>
    %83 = arith.addf %80, %82 : vector<8x128xf32>
    %cst_50 = arith.constant dense<0xFF800000> : vector<8xf32>
    %84 = vector.multi_reduction <maximumf>, %83, %cst_50 [1] : vector<8x128xf32> to vector<8xf32>
    %85 = vector.shape_cast %84 : vector<8xf32> to vector<8x1xf32>
    %86 = vector.broadcast %85 : vector<8x1xf32> to vector<8x128xf32>
    %87 = arith.subf %83, %86 : vector<8x128xf32>
    %88 = math.exp %87 : vector<8x128xf32>
    %cst_51 = arith.constant dense<0.000000e+00> : vector<8x2xf32>
    %89 = tpu.matmul %88, %18, %cst_51 {dimension_numbers = #tpu.dot_dimension_numbers<[1], [0], [0], [1], [0, 0, 1, 1], [], []>} : vector<8x128xf32>, vector<128x2xf32>, vector<8x2xf32> -> vector<8x2xf32>
    %90 = vector.extract_strided_slice %89 {offsets = [0, 0], sizes = [8, 1], strides = [1, 1]} : vector<8x2xf32> to vector<8x1xf32>
    %cst_52 = arith.constant 1.000000e+00 : f32
    %91 = vector.broadcast %cst_52 : f32 to vector<8x1xf32>
    %92 = arith.divf %91, %90 : vector<8x1xf32>
    %93 = vector.broadcast %92 : vector<8x1xf32> to vector<8x128xf32>
    %94 = arith.mulf %88, %93 : vector<8x128xf32>
    %c0_53 = arith.constant 0 : index
    %c384_54 = arith.constant 384 : index
    %95 = vector.load %arg9[%c0_53, %c384_54] : memref<8x512xf32, #tpu.memory_space<vmem>>, vector<8x128xf32>
    tpu.vector_store %arg9[%c0_53, %c384_54], %94 {strides = array<i32>} : memref<8x512xf32, #tpu.memory_space<vmem>>, vector<8x128xf32>,
    %96 = vector.extract_strided_slice %89 {offsets = [0, 1], sizes = [8, 1], strides = [1, 1]} : vector<8x2xf32> to vector<8x1xf32>
    %97 = arith.mulf %96, %92 : vector<8x1xf32>
    %c0_55 = arith.constant 0 : index
    %c3 = arith.constant 3 : index
    %98 = vector.load %arg10[%c0_55, %c3] : memref<8x4xf32, #tpu.memory_space<vmem>>, vector<8x1xf32>
    tpu.vector_store %arg10[%c0_55, %c3], %97 {strides = array<i32>} : memref<8x4xf32, #tpu.memory_space<vmem>>, vector<8x1xf32>,
    return
  }
  func.func @transform_0(%arg0: i32) -> (i32, i32) {
    %c0_i32 = arith.constant 0 : i32
    %c0_i32_0 = arith.constant 0 : i32
    return %arg0, %c0_i32 : i32, i32
  }
  func.func @transform_1(%arg0: i32) -> (i32, i32) {
    %c0_i32 = arith.constant 0 : i32
    %c0_i32_0 = arith.constant 0 : i32
    %c0_i32_1 = arith.constant 0 : i32
    return %c0_i32, %c0_i32_0 : i32, i32
  }
  func.func @transform_2(%arg0: i32) -> (i32, i32) {
    %c0_i32 = arith.constant 0 : i32
    %c0_i32_0 = arith.constant 0 : i32
    %c0_i32_1 = arith.constant 0 : i32
    return %c0_i32, %c0_i32_0 : i32, i32
  }
  func.func @transform_3(%arg0: i32) -> (i32, i32) {
    %c0_i32 = arith.constant 0 : i32
    %c0_i32_0 = arith.constant 0 : i32
    %c0_i32_1 = arith.constant 0 : i32
    return %c0_i32, %c0_i32_0 : i32, i32
  }
  func.func @transform_4(%arg0: i32) -> (i32, i32) {
    %c0_i32 = arith.constant 0 : i32
    %c0_i32_0 = arith.constant 0 : i32
    %c0_i32_1 = arith.constant 0 : i32
    return %c0_i32, %c0_i32_0 : i32, i32
  }
  func.func @transform_5(%arg0: i32) -> (i32, i32) {
    %c0_i32 = arith.constant 0 : i32
    %c0_i32_0 = arith.constant 0 : i32
    %c0_i32_1 = arith.constant 0 : i32
    return %c0_i32, %c0_i32_0 : i32, i32
  }
  func.func @transform_6(%arg0: i32) -> (i32, i32) {
    %c0_i32 = arith.constant 0 : i32
    %c0_i32_0 = arith.constant 0 : i32
    %c0_i32_1 = arith.constant 0 : i32
    return %c0_i32, %c0_i32_0 : i32, i32
  }
  func.func @transform_7(%arg0: i32) -> (i32, i32) {
    %c0_i32 = arith.constant 0 : i32
    %c0_i32_0 = arith.constant 0 : i32
    %c0_i32_1 = arith.constant 0 : i32
    return %c0_i32, %c0_i32_0 : i32, i32
  }
  func.func @transform_8(%arg0: i32) -> (i32, i32) {
    %c0_i32 = arith.constant 0 : i32
    %c0_i32_0 = arith.constant 0 : i32
    return %arg0, %c0_i32 : i32, i32
  }
  func.func @transform_9(%arg0: i32) -> (i32, i32) {
    %c0_i32 = arith.constant 0 : i32
    %c0_i32_0 = arith.constant 0 : i32
    return %arg0, %c0_i32 : i32, i32
  }
}

</mosaic_0001>

<llo_original>
// kernel: tpu_custom_call.1
$region0: #{tpu_custom_call.1}
  #allocation0 [shape = 'u32[]', space=smem, size = 0x4, offset = 0x4, fixed_abs, tag = 'smem constant byte address 0x4 - core index']
  #allocation1 [shape = 'u32[144,128]{1,0:T(1,128)}', space=vmem, size = 0x12000, scoped, tag = 'internal scratch']
  %s0 = inlined_call_operand.vmem [shape: f32[8,32], index: 0, kind: input, shape index: {}]
  %s1 = inlined_call_operand.vmem [shape: bf16[32,128], index: 1, kind: input, shape index: {}]
  %s2 = inlined_call_operand.vmem [shape: f32[1,128], index: 2, kind: input, shape index: {}]
  %s3 = inlined_call_operand.vmem [shape: bf16[128,128], index: 3, kind: input, shape index: {}]
  %s4 = inlined_call_operand.vmem [shape: f32[1,128], index: 4, kind: input, shape index: {}]
  %s5 = inlined_call_operand.hbm [shape: bf16[128,512], index: 5, kind: input, shape index: {}]
  %s6 = inlined_call_operand.vmem [shape: f32[1,512], index: 6, kind: input, shape index: {}]
  %s7 = inlined_call_operand.vmem [shape: f32[128,2], index: 7, kind: input, shape index: {}]
  %s8 = inlined_call_operand.hbm [shape: f32[8,512], index: 8, kind: output, shape index: {0}]
  %s9 = inlined_call_operand.vmem [shape: f32[8,4], index: 9, kind: output, shape index: {1}]
  %10 = xla_tuple %s8, %s9
  %s11 = sld [smem:[#allocation0]]
  $region54: #{tpu_custom_call.1} parent=0
    _
  %s13 = ssub.s32 1, %s11
  %s14 = scalar_select 0, %s13, %s11
  $region1: #{tpu_custom_call.1} parent=0
    #allocation2 [shape = 'u8[131072]{0}', space=vmem, size = 0x20000, scoped, tag = 'input window, operand 5, single buffered']
    #allocation3 [shape = 's32[1]{0}', space=sflag, size = 0x4, scoped, tag = 'scoped memory for tpu_custom_call.1']
    #allocation4 [shape = 's32[1]{0}', space=sflag, size = 0x4, scoped, tag = 'scoped memory for tpu_custom_call.1']
    #allocation5 [shape = 'u8[16384]{0}', space=vmem, size = 0x4000, scoped, tag = 'output window, operand 0, single buffered']
    %15 = vsyncpa [#allocation3], 0
    %16 = vsyncpa [#allocation4], 0
    // Predicated region
    $region2: #{tpu_custom_call.1} parent=1 // pred_check
      _
    $region3: #{tpu_custom_call.1} parent=1 // pred_check_branch
      %18 = sbr.rel (0) target = $region5
    $region4: #{tpu_custom_call.1} parent=1 // pred_region
      _
    $region5: #{tpu_custom_call.1} parent=1 // pred_fallthru
      _
    // Predicated region
    $region6: #{tpu_custom_call.1} parent=1 // pred_check
      _
    $region7: #{tpu_custom_call.1} parent=1 // pred_check_branch
      %20 = sbr.rel (0) target = $region9
    $region8: #{tpu_custom_call.1} parent=1 // pred_region
      _
    $region9: #{tpu_custom_call.1} parent=1 // pred_fallthru
      _
    // Predicated region
    $region10: #{tpu_custom_call.1} parent=1 // pred_check
      _
    $region11: #{tpu_custom_call.1} parent=1 // pred_check_branch
      %22 = sbr.rel (0) target = $region13
    $region12: #{tpu_custom_call.1} parent=1 // pred_region
      _
    $region13: #{tpu_custom_call.1} parent=1 // pred_fallthru
      _
    // Predicated region
    $region14: #{tpu_custom_call.1} parent=1 // pred_check
      _
    $region15: #{tpu_custom_call.1} parent=1 // pred_check_branch
      %24 = sbr.rel (0) target = $region17
    $region16: #{tpu_custom_call.1} parent=1 // pred_region
      _
    $region17: #{tpu_custom_call.1} parent=1 // pred_fallthru
      _
    // Predicated region
    $region18: #{tpu_custom_call.1} parent=1 // pred_check
      _
    $region19: #{tpu_custom_call.1} parent=1 // pred_check_branch
      %26 = sbr.rel (0) target = $region21
    $region20: #{tpu_custom_call.1} parent=1 // pred_region
      _
    $region21: #{tpu_custom_call.1} parent=1 // pred_fallthru
      _
    // Predicated region
    $region22: #{tpu_custom_call.1} parent=1 // pred_check
      _
    $region23: #{tpu_custom_call.1} parent=1 // pred_check_branch
      %28 = sbr.rel (0) target = $region25
    $region24: #{tpu_custom_call.1} parent=1 // pred_region
      %s30 = ssub.s32 4096, 4096
      %31 = vsyncadd [#allocation3], %s30
      %s32 = sshll.u32 [#allocation2], 4
      %s33 = int_to_ptr.vmem [resolvable:$true] %s32
      %38 = dma.hbm_to_vmem [thread:$0]  %s5, 4096, %s33, [#allocation3], 256, 256, 16
    $region25: #{tpu_custom_call.1} parent=1 // pred_fallthru
      _
    // Predicated region
    $region26: #{tpu_custom_call.1} parent=1 // pred_check
      _
    $region27: #{tpu_custom_call.1} parent=1 // pred_check_branch
      %40 = sbr.rel (0) target = $region29
    $region28: #{tpu_custom_call.1} parent=1 // pred_region
      _
    $region29: #{tpu_custom_call.1} parent=1 // pred_fallthru
      _
    // Predicated region
    $region30: #{tpu_custom_call.1} parent=1 // pred_check
      _
    $region31: #{tpu_custom_call.1} parent=1 // pred_check_branch
      %42 = sbr.rel (0) target = $region33
    $region32: #{tpu_custom_call.1} parent=1 // pred_region
      _
    $region33: #{tpu_custom_call.1} parent=1 // pred_fallthru
      _
    // Predicated region
    $region34: #{tpu_custom_call.1} parent=1 // pred_check
      _
    $region35: #{tpu_custom_call.1} parent=1 // pred_check_branch
      %44 = sbr.rel (0) target = $region37
    $region36: #{tpu_custom_call.1} parent=1 // pred_region
      %45 = dma.done [#allocation3], 4096
    $region37: #{tpu_custom_call.1} parent=1 // pred_fallthru
      _
    %v47 = vld [vmem:[%s0] sm:$0xff]
    %v48 = vpack.c.bf16 %v47, %v47
    %v49 = vld [vmem:[%s1] sm:$0xf]
    %v50 = vld [vmem:[%s1 + $0x4] sm:$0xf]
    %v51 = vld [vmem:[%s1 + $0x8] sm:$0xf]
    %v52 = vld [vmem:[%s1 + $0xc] sm:$0xf]
    %v53 = vld [vmem:[%s2] sm:$0x1]
    %v55 = vlaneseq
    %v56 = vshrl.u32 %v55, 7
    %v57 = vsub.s32 0, %v56
    %v58 = vrot.slane %v53, %v57
    %v64 = vunpack.c.l.b16 %v49
    %v65 = vunpack.c.l.b16 %v50
    %v66 = vunpack.c.l.b16 %v51
    %v67 = vunpack.c.l.b16 %v52
    %v68 = vpack.c.b16 %v65, %v64
    %v69 = vpack.c.b16 %v67, %v66
    %vm72 = vcmask 261120
    %v74 = vsel %vm72, %v48, 0
    %76 = vmatprep.subr.bf16.mxu0 0
    %77 = vmatpush1.bf16.msra.mxu0 0
    %78 = vmatprep.subr.bf16.mxu0 0
    %79 = vmatpush1.bf16.msra.mxu0 0
    %80 = vmatprep.subr.bf16.mxu0 0
    %81 = vmatpush1.bf16.msra.mxu0 0
    %82 = vmatprep.subr.bf16.mxu0 0
    %83 = vmatpush1.bf16.msra.mxu0 0
    %84 = vmatprep.subr.bf16.mxu0 0
    %85 = vmatpush1.bf16.msra.mxu0 0
    %86 = vmatprep.subr.bf16.mxu0 0
    %87 = vmatpush1.bf16.msra.mxu0 0
    %88 = vmatprep.subr.bf16.mxu0 0
    %89 = vmatpush1.bf16.msra.mxu0 %v69
    %90 = vmatprep.subr.bf16.mxu0 0
    %91 = vmatpush1.bf16.msra.mxu0 %v68
    %92 = vmatprep.subr.bf16.mxu0 0
    %93 = vmatpush2.bf16.msra.mxu0 0
    %94 = vmatprep.subr.bf16.mxu0 0
    %95 = vmatpush2.bf16.msra.mxu0 0
    %96 = vmatprep.subr.bf16.mxu0 0
    %97 = vmatpush2.bf16.msra.mxu0 0
    %98 = vmatprep.subr.bf16.mxu0 0
    %99 = vmatpush2.bf16.msra.mxu0 0
    %100 = vmatprep.subr.bf16.mxu0 0
    %101 = vmatpush2.bf16.msra.mxu0 0
    %102 = vmatprep.subr.bf16.mxu0 0
    %103 = vmatpush2.bf16.msra.mxu0 0
    %104 = vmatprep.subr.bf16.mxu0 0
    %105 = vmatpush2.bf16.msra.mxu0 0
    %106 = vmatprep.subr.bf16.mxu0 0
    %107 = vmatpush2.bf16.msra.mxu0 0
    %108 = vmatprep.mubr.bf16.mxu0 0
    %109 = vmatmul.mubr.bf16.gmra.mxu0 %v74
    %v110 = vpop.f32.mrf.mxu0
    %v111 = vadd.f32 %v58, %v110
    %v112 = vpop.f32.mrf.mxu0
    %v113 = vpop.f32.mrf.mxu0
    %v114 = vpop.f32.mrf.mxu0
    %115 = vdwg.mxu0
    %v116 = vmax.f32 %v111, 0.0
    %v117 = vpack.c.bf16 %v116, %v116
    %v118 = vld [vmem:[%s3] sm:$0xf]
    %v119 = vld [vmem:[%s3 + $0x4] sm:$0xf]
    %v120 = vld [vmem:[%s3 + $0x8] sm:$0xf]
    %v121 = vld [vmem:[%s3 + $0xc] sm:$0xf]
    %v122 = vld [vmem:[%s3 + $0x10] sm:$0xf]
    %v123 = vld [vmem:[%s3 + $0x14] sm:$0xf]
    %v124 = vld [vmem:[%s3 + $0x18] sm:$0xf]
    %v125 = vld [vmem:[%s3 + $0x1c] sm:$0xf]
    %v126 = vld [vmem:[%s3 + $0x20] sm:$0xf]
    %v127 = vld [vmem:[%s3 + $0x24] sm:$0xf]
    %v128 = vld [vmem:[%s3 + $0x28] sm:$0xf]
    %v129 = vld [vmem:[%s3 + $0x2c] sm:$0xf]
    %v130 = vld [vmem:[%s3 + $0x30] sm:$0xf]
    %v131 = vld [vmem:[%s3 + $0x34] sm:$0xf]
    %v132 = vld [vmem:[%s3 + $0x38] sm:$0xf]
    %v133 = vld [vmem:[%s3 + $0x3c] sm:$0xf]
    %v134 = vld [vmem:[%s4] sm:$0x1]
    %v136 = vlaneseq
    %v137 = vshrl.u32 %v136, 7
    %v138 = vsub.s32 0, %v137
    %v139 = vrot.slane %v134, %v138
    %v157 = vunpack.c.l.b16 %v118
    %v158 = vunpack.c.l.b16 %v119
    %v159 = vunpack.c.l.b16 %v120
    %v160 = vunpack.c.l.b16 %v121
    %v161 = vunpack.c.l.b16 %v122
    %v162 = vunpack.c.l.b16 %v123
    %v163 = vunpack.c.l.b16 %v124
    %v164 = vunpack.c.l.b16 %v125
    %v165 = vunpack.c.l.b16 %v126
    %v166 = vunpack.c.l.b16 %v127
    %v167 = vunpack.c.l.b16 %v128
    %v168 = vunpack.c.l.b16 %v129
    %v169 = vunpack.c.l.b16 %v130
    %v170 = vunpack.c.l.b16 %v131
    %v171 = vunpack.c.l.b16 %v132
    %v172 = vunpack.c.l.b16 %v133
    %v173 = vpack.c.b16 %v158, %v157
    %v174 = vpack.c.b16 %v160, %v159
    %v175 = vpack.c.b16 %v162, %v161
    %v176 = vpack.c.b16 %v164, %v163
    %v177 = vpack.c.b16 %v166, %v165
    %v178 = vpack.c.b16 %v168, %v167
    %v179 = vpack.c.b16 %v170, %v169
    %v180 = vpack.c.b16 %v172, %v171
    %189 = vmatprep.subr.bf16.mxu0 0
    %190 = vmatpush1.bf16.msra.mxu0 %v180
    %191 = vmatprep.subr.bf16.mxu0 0
    %192 = vmatpush1.bf16.msra.mxu0 %v179
    %193 = vmatprep.subr.bf16.mxu0 0
    %194 = vmatpush1.bf16.msra.mxu0 %v178
    %195 = vmatprep.subr.bf16.mxu0 0
    %196 = vmatpush1.bf16.msra.mxu0 %v177
    %197 = vmatprep.subr.bf16.mxu0 0
    %198 = vmatpush1.bf16.msra.mxu0 %v176
    %199 = vmatprep.subr.bf16.mxu0 0
    %200 = vmatpush1.bf16.msra.mxu0 %v175
    %201 = vmatprep.subr.bf16.mxu0 0
    %202 = vmatpush1.bf16.msra.mxu0 %v174
    %203 = vmatprep.subr.bf16.mxu0 0
    %204 = vmatpush1.bf16.msra.mxu0 %v173
    %205 = vmatprep.subr.bf16.mxu0 0
    %206 = vmatpush2.bf16.msra.mxu0 0
    %207 = vmatprep.subr.bf16.mxu0 0
    %208 = vmatpush2.bf16.msra.mxu0 0
    %209 = vmatprep.subr.bf16.mxu0 0
    %210 = vmatpush2.bf16.msra.mxu0 0
    %211 = vmatprep.subr.bf16.mxu0 0
    %212 = vmatpush2.bf16.msra.mxu0 0
    %213 = vmatprep.subr.bf16.mxu0 0
    %214 = vmatpush2.bf16.msra.mxu0 0
    %215 = vmatprep.subr.bf16.mxu0 0
    %216 = vmatpush2.bf16.msra.mxu0 0
    %217 = vmatprep.subr.bf16.mxu0 0
    %218 = vmatpush2.bf16.msra.mxu0 0
    %219 = vmatprep.subr.bf16.mxu0 0
    %220 = vmatpush2.bf16.msra.mxu0 0
    %221 = vmatprep.mubr.bf16.mxu0 0
    %222 = vmatmul.mubr.bf16.gmra.mxu0 %v117
    %v223 = vpop.f32.mrf.mxu0
    %v224 = vadd.f32 %v139, %v223
    %v225 = vpop.f32.mrf.mxu0
    %v226 = vpop.f32.mrf.mxu0
    %v227 = vpop.f32.mrf.mxu0
    %228 = vdwg.mxu0
    %v229 = vmax.f32 %v224, 0.0
    %v230 = vpack.c.bf16 %v229, %v229
    %v231 = vld [vmem:[%s7] sm:$0xff]
    %v232 = vld [vmem:[%s7 + $0x8] sm:$0xff]
    %v233 = vld [vmem:[%s7 + $0x10] sm:$0xff]
    %v234 = vld [vmem:[%s7 + $0x18] sm:$0xff]
    %v235 = vld [vmem:[%s7 + $0x20] sm:$0xff]
    %v236 = vld [vmem:[%s7 + $0x28] sm:$0xff]
    %v237 = vld [vmem:[%s7 + $0x30] sm:$0xff]
    %v238 = vld [vmem:[%s7 + $0x38] sm:$0xff]
    %v239 = vld [vmem:[%s7 + $0x40] sm:$0xff]
    %v240 = vld [vmem:[%s7 + $0x48] sm:$0xff]
    %v241 = vld [vmem:[%s7 + $0x50] sm:$0xff]
    %v242 = vld [vmem:[%s7 + $0x58] sm:$0xff]
    %v243 = vld [vmem:[%s7 + $0x60] sm:$0xff]
    %v244 = vld [vmem:[%s7 + $0x68] sm:$0xff]
    %v245 = vld [vmem:[%s7 + $0x70] sm:$0xff]
    %v246 = vld [vmem:[%s7 + $0x78] sm:$0xff]
    %v247 = vld [vmem:[#allocation2] sm:$0xf]
    %v248 = vld [vmem:[#allocation2 + $0x10] sm:$0xf]
    %v249 = vld [vmem:[#allocation2 + $0x20] sm:$0xf]
    %v250 = vld [vmem:[#allocation2 + $0x30] sm:$0xf]
    %v251 = vld [vmem:[#allocation2 + $0x40] sm:$0xf]
    %v252 = vld [vmem:[#allocation2 + $0x50] sm:$0xf]
    %v253 = vld [vmem:[#allocation2 + $0x60] sm:$0xf]
    %v254 = vld [vmem:[#allocation2 + $0x70] sm:$0xf]
    %v255 = vld [vmem:[#allocation2 + $0x80] sm:$0xf]
    %v256 = vld [vmem:[#allocation2 + $0x90] sm:$0xf]
    %v257 = vld [vmem:[#allocation2 + $0xa0] sm:$0xf]
    %v258 = vld [vmem:[#allocation2 + $0xb0] sm:$0xf]
    %v259 = vld [vmem:[#allocation2 + $0xc0] sm:$0xf]
    %v260 = vld [vmem:[#allocation2 + $0xd0] sm:$0xf]
    %v261 = vld [vmem:[#allocation2 + $0xe0] sm:$0xf]
    %v262 = vld [vmem:[#allocation2 + $0xf0] sm:$0xf]
    %v263 = vld [vmem:[%s6] sm:$0x1]
    %v265 = vlaneseq
    %v266 = vshrl.u32 %v265, 7
    %v267 = vsub.s32 0, %v266
    %v268 = vrot.slane %v263, %v267
    %v286 = vunpack.c.l.b16 %v247
    %v287 = vunpack.c.l.b16 %v248
    %v288 = vunpack.c.l.b16 %v249
    %v289 = vunpack.c.l.b16 %v250
    %v290 = vunpack.c.l.b16 %v251
    %v291 = vunpack.c.l.b16 %v252
    %v292 = vunpack.c.l.b16 %v253
    %v293 = vunpack.c.l.b16 %v254
    %v294 = vunpack.c.l.b16 %v255
    %v295 = vunpack.c.l.b16 %v256
    %v296 = vunpack.c.l.b16 %v257
    %v297 = vunpack.c.l.b16 %v258
    %v298 = vunpack.c.l.b16 %v259
    %v299 = vunpack.c.l.b16 %v260
    %v300 = vunpack.c.l.b16 %v261
    %v301 = vunpack.c.l.b16 %v262
    %v302 = vpack.c.b16 %v287, %v286
    %v303 = vpack.c.b16 %v289, %v288
    %v304 = vpack.c.b16 %v291, %v290
    %v305 = vpack.c.b16 %v293, %v292
    %v306 = vpack.c.b16 %v295, %v294
    %v307 = vpack.c.b16 %v297, %v296
    %v308 = vpack.c.b16 %v299, %v298
    %v309 = vpack.c.b16 %v301, %v300
    %318 = vmatprep.subr.bf16.mxu0 0
    %319 = vmatpush1.bf16.msra.mxu0 %v309
    %320 = vmatprep.subr.bf16.mxu0 0
    %321 = vmatpush1.bf16.msra.mxu0 %v308
    %322 = vmatprep.subr.bf16.mxu0 0
    %323 = vmatpush1.bf16.msra.mxu0 %v307
    %324 = vmatprep.subr.bf16.mxu0 0
    %325 = vmatpush1.bf16.msra.mxu0 %v306
    %326 = vmatprep.subr.bf16.mxu0 0
    %327 = vmatpush1.bf16.msra.mxu0 %v305
    %328 = vmatprep.subr.bf16.mxu0 0
    %329 = vmatpush1.bf16.msra.mxu0 %v304
    %330 = vmatprep.subr.bf16.mxu0 0
    %331 = vmatpush1.bf16.msra.mxu0 %v303
    %332 = vmatprep.subr.bf16.mxu0 0
    %333 = vmatpush1.bf16.msra.mxu0 %v302
    %334 = vmatprep.subr.bf16.mxu0 0
    %335 = vmatpush2.bf16.msra.mxu0 0
    %336 = vmatprep.subr.bf16.mxu0 0
    %337 = vmatpush2.bf16.msra.mxu0 0
    %338 = vmatprep.subr.bf16.mxu0 0
    %339 = vmatpush2.bf16.msra.mxu0 0
    %340 = vmatprep.subr.bf16.mxu0 0
    %341 = vmatpush2.bf16.msra.mxu0 0
    %342 = vmatprep.subr.bf16.mxu0 0
    %343 = vmatpush2.bf16.msra.mxu0 0
    %344 = vmatprep.subr.bf16.mxu0 0
    %345 = vmatpush2.bf16.msra.mxu0 0
    %346 = vmatprep.subr.bf16.mxu0 0
    %347 = vmatpush2.bf16.msra.mxu0 0
    %348 = vmatprep.subr.bf16.mxu0 0
    %349 = vmatpush2.bf16.msra.mxu0 0
    %350 = vmatprep.mubr.bf16.mxu0 0
    %351 = vmatmul.mubr.bf16.gmra.mxu0 %v230
    %v352 = vpop.f32.mrf.mxu0
    %v353 = vadd.f32 %v268, %v352
    %v354 = vpop.f32.mrf.mxu0
    %v355 = vpop.f32.mrf.mxu0
    %v356 = vpop.f32.mrf.mxu0
    %357 = vdwg.mxu0
    %358 = vmax.xlane.f32.xlu0 %v353
    %v359 = vpop.xlane.xlu0 %358
    %v360 = vsub.f32 %v353, %v359
    %v361 = vmul.f32 %v360, 1.442695
    %v362 = vpow.pop %v361
    %363 = vmatprep.subr.mxu0 0.0
    %364 = vmatpush1.msra.mxu0 %v246
    %365 = vmatprep.subr.mxu0 0.0
    %366 = vmatpush1.msra.mxu0 %v245
    %367 = vmatprep.subr.mxu0 0.0
    %368 = vmatpush1.msra.mxu0 %v244
    %369 = vmatprep.subr.mxu0 0.0
    %370 = vmatpush1.msra.mxu0 %v243
    %371 = vmatprep.subr.mxu0 0.0
    %372 = vmatpush1.msra.mxu0 %v242
    %373 = vmatprep.subr.mxu0 0.0
    %374 = vmatpush1.msra.mxu0 %v241
    %375 = vmatprep.subr.mxu0 0.0
    %376 = vmatpush1.msra.mxu0 %v240
    %377 = vmatprep.subr.mxu0 0.0
    %378 = vmatpush1.msra.mxu0 %v239
    %379 = vmatprep.subr.mxu0 0.0
    %380 = vmatpush1.msra.mxu0 %v238
    %381 = vmatprep.subr.mxu0 0.0
    %382 = vmatpush1.msra.mxu0 %v237
    %383 = vmatprep.subr.mxu0 0.0
    %384 = vmatpush1.msra.mxu0 %v236
    %385 = vmatprep.subr.mxu0 0.0
    %386 = vmatpush1.msra.mxu0 %v235
    %387 = vmatprep.subr.mxu0 0.0
    %388 = vmatpush1.msra.mxu0 %v234
    %389 = vmatprep.subr.mxu0 0.0
    %390 = vmatpush1.msra.mxu0 %v233
    %391 = vmatprep.subr.mxu0 0.0
    %392 = vmatpush1.msra.mxu0 %v232
    %393 = vmatprep.subr.mxu0 0.0
    %394 = vmatpush1.msra.mxu0 %v231
    %395 = vmatprep.subr.mxu0 0.0
    %396 = vmatpush2.msra.mxu0 0.0
    %397 = vmatprep.subr.mxu0 0.0
    %398 = vmatpush2.msra.mxu0 0.0
    %399 = vmatprep.subr.mxu0 0.0
    %400 = vmatpush2.msra.mxu0 0.0
    %401 = vmatprep.subr.mxu0 0.0
    %402 = vmatpush2.msra.mxu0 0.0
    %403 = vmatprep.subr.mxu0 0.0
    %404 = vmatpush2.msra.mxu0 0.0
    %405 = vmatprep.subr.mxu0 0.0
    %406 = vmatpush2.msra.mxu0 0.0
    %407 = vmatprep.subr.mxu0 0.0
    %408 = vmatpush2.msra.mxu0 0.0
    %409 = vmatprep.subr.mxu0 0.0
    %410 = vmatpush2.msra.mxu0 0.0
    %411 = vmatprep.subr.mxu0 0.0
    %412 = vmatpush2.msra.mxu0 0.0
    %413 = vmatprep.subr.mxu0 0.0
    %414 = vmatpush2.msra.mxu0 0.0
    %415 = vmatprep.subr.mxu0 0.0
    %416 = vmatpush2.msra.mxu0 0.0
    %417 = vmatprep.subr.mxu0 0.0
    %418 = vmatpush2.msra.mxu0 0.0
    %419 = vmatprep.subr.mxu0 0.0
    %420 = vmatpush2.msra.mxu0 0.0
    %421 = vmatprep.subr.mxu0 0.0
    %422 = vmatpush2.msra.mxu0 0.0
    %423 = vmatprep.subr.mxu0 0.0
    %424 = vmatpush2.msra.mxu0 0.0
    %425 = vmatprep.subr.mxu0 0.0
    %426 = vmatpush2.msra.mxu0 0.0
    %427 = vmatprep.mubr.f32.mxu0 0.0
    %428 = vmatmul.mubr.f32.gmra.mxu0 %v362
    %v429 = vpop.f32.mrf.mxu0
    %v430 = vadd.f32 0.0, %v429
    %v431 = vpop.f32.mrf.mxu0
    %432 = vdwg.mxu0
    %v433 = vrcp.pop %v430
    %v434 = vmul.f32 1.0, %v433
    %436 = vset.pattern.permute.xlu0 0
    %437 = vperm.xlu0 %436, %v434
    %v438 = vpop.permute.xlu0 %437
    %v440 = vmul.f32 %v362, %v438
    %441 = vst [vmem:[#allocation5] sm:$0xff] %v440
    %442 = vrot.lane.b32.xlu0 %v434, 1
    %v443 = vpop.permute.xlu0 %442
    %v445 = vmul.f32 %v430, %v443
    %447 = vrot.lane.b32.xlu0 %v445, 127
    %v448 = vpop.permute.xlu0 %447
    %vm450 = vcmask 7168
    %451 = vst.msk [vmem:[%s9] sm:$0xff] %vm450, %v448
    %v452 = vld [vmem:[#allocation2 + $0x4] sm:$0xf]
    %v453 = vld [vmem:[#allocation2 + $0x14] sm:$0xf]
    %v454 = vld [vmem:[#allocation2 + $0x24] sm:$0xf]
    %v455 = vld [vmem:[#allocation2 + $0x34] sm:$0xf]
    %v456 = vld [vmem:[#allocation2 + $0x44] sm:$0xf]
    %v457 = vld [vmem:[#allocation2 + $0x54] sm:$0xf]
    %v458 = vld [vmem:[#allocation2 + $0x64] sm:$0xf]
    %v459 = vld [vmem:[#allocation2 + $0x74] sm:$0xf]
    %v460 = vld [vmem:[#allocation2 + $0x84] sm:$0xf]
    %v461 = vld [vmem:[#allocation2 + $0x94] sm:$0xf]
    %v462 = vld [vmem:[#allocation2 + $0xa4] sm:$0xf]
    %v463 = vld [vmem:[#allocation2 + $0xb4] sm:$0xf]
    %v464 = vld [vmem:[#allocation2 + $0xc4] sm:$0xf]
    %v465 = vld [vmem:[#allocation2 + $0xd4] sm:$0xf]
    %v466 = vld [vmem:[#allocation2 + $0xe4] sm:$0xf]
    %v467 = vld [vmem:[#allocation2 + $0xf4] sm:$0xf]
    %v468 = vld [vmem:[%s6 + $0x1] sm:$0x1]
    %v470 = vlaneseq
    %v471 = vshrl.u32 %v470, 7
    %v472 = vsub.s32 0, %v471
    %v473 = vrot.slane %v468, %v472
    %v491 = vunpack.c.l.b16 %v452
    %v492 = vunpack.c.l.b16 %v453
    %v493 = vunpack.c.l.b16 %v454
    %v494 = vunpack.c.l.b16 %v455
    %v495 = vunpack.c.l.b16 %v456
    %v496 = vunpack.c.l.b16 %v457
    %v497 = vunpack.c.l.b16 %v458
    %v498 = vunpack.c.l.b16 %v459
    %v499 = vunpack.c.l.b16 %v460
    %v500 = vunpack.c.l.b16 %v461
    %v501 = vunpack.c.l.b16 %v462
    %v502 = vunpack.c.l.b16 %v463
    %v503 = vunpack.c.l.b16 %v464
    %v504 = vunpack.c.l.b16 %v465
    %v505 = vunpack.c.l.b16 %v466
    %v506 = vunpack.c.l.b16 %v467
    %v507 = vpack.c.b16 %v492, %v491
    %v508 = vpack.c.b16 %v494, %v493
    %v509 = vpack.c.b16 %v496, %v495
    %v510 = vpack.c.b16 %v498, %v497
    %v511 = vpack.c.b16 %v500, %v499
    %v512 = vpack.c.b16 %v502, %v501
    %v513 = vpack.c.b16 %v504, %v503
    %v514 = vpack.c.b16 %v506, %v505
    %523 = vmatprep.subr.bf16.mxu0 0
    %524 = vmatpush1.bf16.msra.mxu0 %v514
    %525 = vmatprep.subr.bf16.mxu0 0
    %526 = vmatpush1.bf16.msra.mxu0 %v513
    %527 = vmatprep.subr.bf16.mxu0 0
    %528 = vmatpush1.bf16.msra.mxu0 %v512
    %529 = vmatprep.subr.bf16.mxu0 0
    %530 = vmatpush1.bf16.msra.mxu0 %v511
    %531 = vmatprep.subr.bf16.mxu0 0
    %532 = vmatpush1.bf16.msra.mxu0 %v510
    %533 = vmatprep.subr.bf16.mxu0 0
    %534 = vmatpush1.bf16.msra.mxu0 %v509
    %535 = vmatprep.subr.bf16.mxu0 0
    %536 = vmatpush1.bf16.msra.mxu0 %v508
    %537 = vmatprep.subr.bf16.mxu0 0
    %538 = vmatpush1.bf16.msra.mxu0 %v507
    %539 = vmatprep.subr.bf16.mxu0 0
    %540 = vmatpush2.bf16.msra.mxu0 0
    %541 = vmatprep.subr.bf16.mxu0 0
    %542 = vmatpush2.bf16.msra.mxu0 0
    %543 = vmatprep.subr.bf16.mxu0 0
    %544 = vmatpush2.bf16.msra.mxu0 0
    %545 = vmatprep.subr.bf16.mxu0 0
    %546 = vmatpush2.bf16.msra.mxu0 0
    %547 = vmatprep.subr.bf16.mxu0 0
    %548 = vmatpush2.bf16.msra.mxu0 0
    %549 = vmatprep.subr.bf16.mxu0 0
    %550 = vmatpush2.bf16.msra.mxu0 0
    %551 = vmatprep.subr.bf16.mxu0 0
    %552 = vmatpush2.bf16.msra.mxu0 0
    %553 = vmatprep.subr.bf16.mxu0 0
    %554 = vmatpush2.bf16.msra.mxu0 0
    %555 = vmatprep.mubr.bf16.mxu0 0
    %556 = vmatmul.mubr.bf16.gmra.mxu0 %v230
    %v557 = vpop.f32.mrf.mxu0
    %v558 = vadd.f32 %v473, %v557
    %v559 = vpop.f32.mrf.mxu0
    %v560 = vpop.f32.mrf.mxu0
    %v561 = vpop.f32.mrf.mxu0
    %562 = vdwg.mxu0
    %563 = vmax.xlane.f32.xlu0 %v558
    %v564 = vpop.xlane.xlu0 %563
    %v565 = vsub.f32 %v558, %v564
    %v566 = vmul.f32 %v565, 1.442695
    %v567 = vpow.pop %v566
    %568 = vmatprep.subr.mxu0 0.0
    %569 = vmatpush1.msra.mxu0 %v246
    %570 = vmatprep.subr.mxu0 0.0
    %571 = vmatpush1.msra.mxu0 %v245
    %572 = vmatprep.subr.mxu0 0.0
    %573 = vmatpush1.msra.mxu0 %v244
    %574 = vmatprep.subr.mxu0 0.0
    %575 = vmatpush1.msra.mxu0 %v243
    %576 = vmatprep.subr.mxu0 0.0
    %577 = vmatpush1.msra.mxu0 %v242
    %578 = vmatprep.subr.mxu0 0.0
    %579 = vmatpush1.msra.mxu0 %v241
    %580 = vmatprep.subr.mxu0 0.0
    %581 = vmatpush1.msra.mxu0 %v240
    %582 = vmatprep.subr.mxu0 0.0
    %583 = vmatpush1.msra.mxu0 %v239
    %584 = vmatprep.subr.mxu0 0.0
    %585 = vmatpush1.msra.mxu0 %v238
    %586 = vmatprep.subr.mxu0 0.0
    %587 = vmatpush1.msra.mxu0 %v237
    %588 = vmatprep.subr.mxu0 0.0
    %589 = vmatpush1.msra.mxu0 %v236
    %590 = vmatprep.subr.mxu0 0.0
    %591 = vmatpush1.msra.mxu0 %v235
    %592 = vmatprep.subr.mxu0 0.0
    %593 = vmatpush1.msra.mxu0 %v234
    %594 = vmatprep.subr.mxu0 0.0
    %595 = vmatpush1.msra.mxu0 %v233
    %596 = vmatprep.subr.mxu0 0.0
    %597 = vmatpush1.msra.mxu0 %v232
    %598 = vmatprep.subr.mxu0 0.0
    %599 = vmatpush1.msra.mxu0 %v231
    %600 = vmatprep.subr.mxu0 0.0
    %601 = vmatpush2.msra.mxu0 0.0
    %602 = vmatprep.subr.mxu0 0.0
    %603 = vmatpush2.msra.mxu0 0.0
    %604 = vmatprep.subr.mxu0 0.0
    %605 = vmatpush2.msra.mxu0 0.0
    %606 = vmatprep.subr.mxu0 0.0
    %607 = vmatpush2.msra.mxu0 0.0
    %608 = vmatprep.subr.mxu0 0.0
    %609 = vmatpush2.msra.mxu0 0.0
    %610 = vmatprep.subr.mxu0 0.0
    %611 = vmatpush2.msra.mxu0 0.0
    %612 = vmatprep.subr.mxu0 0.0
    %613 = vmatpush2.msra.mxu0 0.0
    %614 = vmatprep.subr.mxu0 0.0
    %615 = vmatpush2.msra.mxu0 0.0
    %616 = vmatprep.subr.mxu0 0.0
    %617 = vmatpush2.msra.mxu0 0.0
    %618 = vmatprep.subr.mxu0 0.0
    %619 = vmatpush2.msra.mxu0 0.0
    %620 = vmatprep.subr.mxu0 0.0
    %621 = vmatpush2.msra.mxu0 0.0
    %622 = vmatprep.subr.mxu0 0.0
    %623 = vmatpush2.msra.mxu0 0.0
    %624 = vmatprep.subr.mxu0 0.0
    %625 = vmatpush2.msra.mxu0 0.0
    %626 = vmatprep.subr.mxu0 0.0
    %627 = vmatpush2.msra.mxu0 0.0
    %628 = vmatprep.subr.mxu0 0.0
    %629 = vmatpush2.msra.mxu0 0.0
    %630 = vmatprep.subr.mxu0 0.0
    %631 = vmatpush2.msra.mxu0 0.0
    %632 = vmatprep.mubr.f32.mxu0 0.0
    %633 = vmatmul.mubr.f32.gmra.mxu0 %v567
    %v634 = vpop.f32.mrf.mxu0
    %v635 = vadd.f32 0.0, %v634
    %v636 = vpop.f32.mrf.mxu0
    %637 = vdwg.mxu0
    %v638 = vrcp.pop %v635
    %v639 = vmul.f32 1.0, %v638
    %641 = vset.pattern.permute.xlu0 0
    %642 = vperm.xlu0 %641, %v639
    %v643 = vpop.permute.xlu0 %642
    %v645 = vmul.f32 %v567, %v643
    %646 = vst [vmem:[#allocation5 + $0x8] sm:$0xff] %v645
    %647 = vrot.lane.b32.xlu0 %v639, 1
    %v648 = vpop.permute.xlu0 %647
    %v650 = vmul.f32 %v635, %v648
    %vm651 = vcmask 15368
    %652 = vst.msk [vmem:[%s9] sm:$0xff] %vm651, %v650
    %v653 = vld [vmem:[#allocation2 + $0x8] sm:$0xf]
    %v654 = vld [vmem:[#allocation2 + $0x18] sm:$0xf]
    %v655 = vld [vmem:[#allocation2 + $0x28] sm:$0xf]
    %v656 = vld [vmem:[#allocation2 + $0x38] sm:$0xf]
    %v657 = vld [vmem:[#allocation2 + $0x48] sm:$0xf]
    %v658 = vld [vmem:[#allocation2 + $0x58] sm:$0xf]
    %v659 = vld [vmem:[#allocation2 + $0x68] sm:$0xf]
    %v660 = vld [vmem:[#allocation2 + $0x78] sm:$0xf]
    %v661 = vld [vmem:[#allocation2 + $0x88] sm:$0xf]
    %v662 = vld [vmem:[#allocation2 + $0x98] sm:$0xf]
    %v663 = vld [vmem:[#allocation2 + $0xa8] sm:$0xf]
    %v664 = vld [vmem:[#allocation2 + $0xb8] sm:$0xf]
    %v665 = vld [vmem:[#allocation2 + $0xc8] sm:$0xf]
    %v666 = vld [vmem:[#allocation2 + $0xd8] sm:$0xf]
    %v667 = vld [vmem:[#allocation2 + $0xe8] sm:$0xf]
    %v668 = vld [vmem:[#allocation2 + $0xf8] sm:$0xf]
    %v669 = vld [vmem:[%s6 + $0x2] sm:$0x1]
    %v671 = vlaneseq
    %v672 = vshrl.u32 %v671, 7
    %v673 = vsub.s32 0, %v672
    %v674 = vrot.slane %v669, %v673
    %v692 = vunpack.c.l.b16 %v653
    %v693 = vunpack.c.l.b16 %v654
    %v694 = vunpack.c.l.b16 %v655
    %v695 = vunpack.c.l.b16 %v656
    %v696 = vunpack.c.l.b16 %v657
    %v697 = vunpack.c.l.b16 %v658
    %v698 = vunpack.c.l.b16 %v659
    %v699 = vunpack.c.l.b16 %v660
    %v700 = vunpack.c.l.b16 %v661
    %v701 = vunpack.c.l.b16 %v662
    %v702 = vunpack.c.l.b16 %v663
    %v703 = vunpack.c.l.b16 %v664
    %v704 = vunpack.c.l.b16 %v665
    %v705 = vunpack.c.l.b16 %v666
    %v706 = vunpack.c.l.b16 %v667
    %v707 = vunpack.c.l.b16 %v668
    %v708 = vpack.c.b16 %v693, %v692
    %v709 = vpack.c.b16 %v695, %v694
    %v710 = vpack.c.b16 %v697, %v696
    %v711 = vpack.c.b16 %v699, %v698
    %v712 = vpack.c.b16 %v701, %v700
    %v713 = vpack.c.b16 %v703, %v702
    %v714 = vpack.c.b16 %v705, %v704
    %v715 = vpack.c.b16 %v707, %v706
    %724 = vmatprep.subr.bf16.mxu0 0
    %725 = vmatpush1.bf16.msra.mxu0 %v715
    %726 = vmatprep.subr.bf16.mxu0 0
    %727 = vmatpush1.bf16.msra.mxu0 %v714
    %728 = vmatprep.subr.bf16.mxu0 0
    %729 = vmatpush1.bf16.msra.mxu0 %v713
    %730 = vmatprep.subr.bf16.mxu0 0
    %731 = vmatpush1.bf16.msra.mxu0 %v712
    %732 = vmatprep.subr.bf16.mxu0 0
    %733 = vmatpush1.bf16.msra.mxu0 %v711
    %734 = vmatprep.subr.bf16.mxu0 0
    %735 = vmatpush1.bf16.msra.mxu0 %v710
    %736 = vmatprep.subr.bf16.mxu0 0
    %737 = vmatpush1.bf16.msra.mxu0 %v709
    %738 = vmatprep.subr.bf16.mxu0 0
    %739 = vmatpush1.bf16.msra.mxu0 %v708
    %740 = vmatprep.subr.bf16.mxu0 0
    %741 = vmatpush2.bf16.msra.mxu0 0
    %742 = vmatprep.subr.bf16.mxu0 0
    %743 = vmatpush2.bf16.msra.mxu0 0
    %744 = vmatprep.subr.bf16.mxu0 0
    %745 = vmatpush2.bf16.msra.mxu0 0
    %746 = vmatprep.subr.bf16.mxu0 0
    %747 = vmatpush2.bf16.msra.mxu0 0
    %748 = vmatprep.subr.bf16.mxu0 0
    %749 = vmatpush2.bf16.msra.mxu0 0
    %750 = vmatprep.subr.bf16.mxu0 0
    %751 = vmatpush2.bf16.msra.mxu0 0
    %752 = vmatprep.subr.bf16.mxu0 0
    %753 = vmatpush2.bf16.msra.mxu0 0
    %754 = vmatprep.subr.bf16.mxu0 0
    %755 = vmatpush2.bf16.msra.mxu0 0
    %756 = vmatprep.mubr.bf16.mxu0 0
    %757 = vmatmul.mubr.bf16.gmra.mxu0 %v230
    %v758 = vpop.f32.mrf.mxu0
    %v759 = vadd.f32 %v674, %v758
    %v760 = vpop.f32.mrf.mxu0
    %v761 = vpop.f32.mrf.mxu0
    %v762 = vpop.f32.mrf.mxu0
    %763 = vdwg.mxu0
    %764 = vmax.xlane.f32.xlu0 %v759
    %v765 = vpop.xlane.xlu0 %764
    %v766 = vsub.f32 %v759, %v765
    %v767 = vmul.f32 %v766, 1.442695
    %v768 = vpow.pop %v767
    %769 = vmatprep.subr.mxu0 0.0
    %770 = vmatpush1.msra.mxu0 %v246
    %771 = vmatprep.subr.mxu0 0.0
    %772 = vmatpush1.msra.mxu0 %v245
    %773 = vmatprep.subr.mxu0 0.0
    %774 = vmatpush1.msra.mxu0 %v244
    %775 = vmatprep.subr.mxu0 0.0
    %776 = vmatpush1.msra.mxu0 %v243
    %777 = vmatprep.subr.mxu0 0.0
    %778 = vmatpush1.msra.mxu0 %v242
    %779 = vmatprep.subr.mxu0 0.0
    %780 = vmatpush1.msra.mxu0 %v241
    %781 = vmatprep.subr.mxu0 0.0
    %782 = vmatpush1.msra.mxu0 %v240
    %783 = vmatprep.subr.mxu0 0.0
    %784 = vmatpush1.msra.mxu0 %v239
    %785 = vmatprep.subr.mxu0 0.0
    %786 = vmatpush1.msra.mxu0 %v238
    %787 = vmatprep.subr.mxu0 0.0
    %788 = vmatpush1.msra.mxu0 %v237
    %789 = vmatprep.subr.mxu0 0.0
    %790 = vmatpush1.msra.mxu0 %v236
    %791 = vmatprep.subr.mxu0 0.0
    %792 = vmatpush1.msra.mxu0 %v235
    %793 = vmatprep.subr.mxu0 0.0
    %794 = vmatpush1.msra.mxu0 %v234
    %795 = vmatprep.subr.mxu0 0.0
    %796 = vmatpush1.msra.mxu0 %v233
    %797 = vmatprep.subr.mxu0 0.0
    %798 = vmatpush1.msra.mxu0 %v232
    %799 = vmatprep.subr.mxu0 0.0
    %800 = vmatpush1.msra.mxu0 %v231
    %801 = vmatprep.subr.mxu0 0.0
    %802 = vmatpush2.msra.mxu0 0.0
    %803 = vmatprep.subr.mxu0 0.0
    %804 = vmatpush2.msra.mxu0 0.0
    %805 = vmatprep.subr.mxu0 0.0
    %806 = vmatpush2.msra.mxu0 0.0
    %807 = vmatprep.subr.mxu0 0.0
    %808 = vmatpush2.msra.mxu0 0.0
    %809 = vmatprep.subr.mxu0 0.0
    %810 = vmatpush2.msra.mxu0 0.0
    %811 = vmatprep.subr.mxu0 0.0
    %812 = vmatpush2.msra.mxu0 0.0
    %813 = vmatprep.subr.mxu0 0.0
    %814 = vmatpush2.msra.mxu0 0.0
    %815 = vmatprep.subr.mxu0 0.0
    %816 = vmatpush2.msra.mxu0 0.0
    %817 = vmatprep.subr.mxu0 0.0
    %818 = vmatpush2.msra.mxu0 0.0
    %819 = vmatprep.subr.mxu0 0.0
    %820 = vmatpush2.msra.mxu0 0.0
    %821 = vmatprep.subr.mxu0 0.0
    %822 = vmatpush2.msra.mxu0 0.0
    %823 = vmatprep.subr.mxu0 0.0
    %824 = vmatpush2.msra.mxu0 0.0
    %825 = vmatprep.subr.mxu0 0.0
    %826 = vmatpush2.msra.mxu0 0.0
    %827 = vmatprep.subr.mxu0 0.0
    %828 = vmatpush2.msra.mxu0 0.0
    %829 = vmatprep.subr.mxu0 0.0
    %830 = vmatpush2.msra.mxu0 0.0
    %831 = vmatprep.subr.mxu0 0.0
    %832 = vmatpush2.msra.mxu0 0.0
    %833 = vmatprep.mubr.f32.mxu0 0.0
    %834 = vmatmul.mubr.f32.gmra.mxu0 %v768
    %v835 = vpop.f32.mrf.mxu0
    %v836 = vadd.f32 0.0, %v835
    %v837 = vpop.f32.mrf.mxu0
    %838 = vdwg.mxu0
    %v839 = vrcp.pop %v836
    %v840 = vmul.f32 1.0, %v839
    %842 = vset.pattern.permute.xlu0 0
    %843 = vperm.xlu0 %842, %v840
    %v844 = vpop.permute.xlu0 %843
    %v846 = vmul.f32 %v768, %v844
    %847 = vst [vmem:[#allocation5 + $0x10] sm:$0xff] %v846
    %848 = vrot.lane.b32.xlu0 %v840, 1
    %v849 = vpop.permute.xlu0 %848
    %v851 = vmul.f32 %v836, %v849
    %853 = vrot.lane.b32.xlu0 %v851, 1
    %v854 = vpop.permute.xlu0 %853
    %vm856 = vcmask 23568
    %857 = vst.msk [vmem:[%s9] sm:$0xff] %vm856, %v854
    %v858 = vld [vmem:[#allocation2 + $0xc] sm:$0xf]
    %v859 = vld [vmem:[#allocation2 + $0x1c] sm:$0xf]
    %v860 = vld [vmem:[#allocation2 + $0x2c] sm:$0xf]
    %v861 = vld [vmem:[#allocation2 + $0x3c] sm:$0xf]
    %v862 = vld [vmem:[#allocation2 + $0x4c] sm:$0xf]
    %v863 = vld [vmem:[#allocation2 + $0x5c] sm:$0xf]
    %v864 = vld [vmem:[#allocation2 + $0x6c] sm:$0xf]
    %v865 = vld [vmem:[#allocation2 + $0x7c] sm:$0xf]
    %v866 = vld [vmem:[#allocation2 + $0x8c] sm:$0xf]
    %v867 = vld [vmem:[#allocation2 + $0x9c] sm:$0xf]
    %v868 = vld [vmem:[#allocation2 + $0xac] sm:$0xf]
    %v869 = vld [vmem:[#allocation2 + $0xbc] sm:$0xf]
    %v870 = vld [vmem:[#allocation2 + $0xcc] sm:$0xf]
    %v871 = vld [vmem:[#allocation2 + $0xdc] sm:$0xf]
    %v872 = vld [vmem:[#allocation2 + $0xec] sm:$0xf]
    %v873 = vld [vmem:[#allocation2 + $0xfc] sm:$0xf]
    %v874 = vld [vmem:[%s6 + $0x3] sm:$0x1]
    %v876 = vlaneseq
    %v877 = vshrl.u32 %v876, 7
    %v878 = vsub.s32 0, %v877
    %v879 = vrot.slane %v874, %v878
    %v897 = vunpack.c.l.b16 %v858
    %v898 = vunpack.c.l.b16 %v859
    %v899 = vunpack.c.l.b16 %v860
    %v900 = vunpack.c.l.b16 %v861
    %v901 = vunpack.c.l.b16 %v862
    %v902 = vunpack.c.l.b16 %v863
    %v903 = vunpack.c.l.b16 %v864
    %v904 = vunpack.c.l.b16 %v865
    %v905 = vunpack.c.l.b16 %v866
    %v906 = vunpack.c.l.b16 %v867
    %v907 = vunpack.c.l.b16 %v868
    %v908 = vunpack.c.l.b16 %v869
    %v909 = vunpack.c.l.b16 %v870
    %v910 = vunpack.c.l.b16 %v871
    %v911 = vunpack.c.l.b16 %v872
    %v912 = vunpack.c.l.b16 %v873
    %v913 = vpack.c.b16 %v898, %v897
    %v914 = vpack.c.b16 %v900, %v899
    %v915 = vpack.c.b16 %v902, %v901
    %v916 = vpack.c.b16 %v904, %v903
    %v917 = vpack.c.b16 %v906, %v905
    %v918 = vpack.c.b16 %v908, %v907
    %v919 = vpack.c.b16 %v910, %v909
    %v920 = vpack.c.b16 %v912, %v911
    %929 = vmatprep.subr.bf16.mxu0 0
    %930 = vmatpush1.bf16.msra.mxu0 %v920
    %931 = vmatprep.subr.bf16.mxu0 0
    %932 = vmatpush1.bf16.msra.mxu0 %v919
    %933 = vmatprep.subr.bf16.mxu0 0
    %934 = vmatpush1.bf16.msra.mxu0 %v918
    %935 = vmatprep.subr.bf16.mxu0 0
    %936 = vmatpush1.bf16.msra.mxu0 %v917
    %937 = vmatprep.subr.bf16.mxu0 0
    %938 = vmatpush1.bf16.msra.mxu0 %v916
    %939 = vmatprep.subr.bf16.mxu0 0
    %940 = vmatpush1.bf16.msra.mxu0 %v915
    %941 = vmatprep.subr.bf16.mxu0 0
    %942 = vmatpush1.bf16.msra.mxu0 %v914
    %943 = vmatprep.subr.bf16.mxu0 0
    %944 = vmatpush1.bf16.msra.mxu0 %v913
    %945 = vmatprep.subr.bf16.mxu0 0
    %946 = vmatpush2.bf16.msra.mxu0 0
    %947 = vmatprep.subr.bf16.mxu0 0
    %948 = vmatpush2.bf16.msra.mxu0 0
    %949 = vmatprep.subr.bf16.mxu0 0
    %950 = vmatpush2.bf16.msra.mxu0 0
    %951 = vmatprep.subr.bf16.mxu0 0
    %952 = vmatpush2.bf16.msra.mxu0 0
    %953 = vmatprep.subr.bf16.mxu0 0
    %954 = vmatpush2.bf16.msra.mxu0 0
    %955 = vmatprep.subr.bf16.mxu0 0
    %956 = vmatpush2.bf16.msra.mxu0 0
    %957 = vmatprep.subr.bf16.mxu0 0
    %958 = vmatpush2.bf16.msra.mxu0 0
    %959 = vmatprep.subr.bf16.mxu0 0
    %960 = vmatpush2.bf16.msra.mxu0 0
    %961 = vmatprep.mubr.bf16.mxu0 0
    %962 = vmatmul.mubr.bf16.gmra.mxu0 %v230
    %v963 = vpop.f32.mrf.mxu0
    %v964 = vadd.f32 %v879, %v963
    %v965 = vpop.f32.mrf.mxu0
    %v966 = vpop.f32.mrf.mxu0
    %v967 = vpop.f32.mrf.mxu0
    %968 = vdwg.mxu0
    %969 = vmax.xlane.f32.xlu0 %v964
    %v970 = vpop.xlane.xlu0 %969
    %v971 = vsub.f32 %v964, %v970
    %v972 = vmul.f32 %v971, 1.442695
    %v973 = vpow.pop %v972
    %974 = vmatprep.subr.mxu0 0.0
    %975 = vmatpush1.msra.mxu0 %v246
    %976 = vmatprep.subr.mxu0 0.0
    %977 = vmatpush1.msra.mxu0 %v245
    %978 = vmatprep.subr.mxu0 0.0
    %979 = vmatpush1.msra.mxu0 %v244
    %980 = vmatprep.subr.mxu0 0.0
    %981 = vmatpush1.msra.mxu0 %v243
    %982 = vmatprep.subr.mxu0 0.0
    %983 = vmatpush1.msra.mxu0 %v242
    %984 = vmatprep.subr.mxu0 0.0
    %985 = vmatpush1.msra.mxu0 %v241
    %986 = vmatprep.subr.mxu0 0.0
    %987 = vmatpush1.msra.mxu0 %v240
    %988 = vmatprep.subr.mxu0 0.0
    %989 = vmatpush1.msra.mxu0 %v239
    %990 = vmatprep.subr.mxu0 0.0
    %991 = vmatpush1.msra.mxu0 %v238
    %992 = vmatprep.subr.mxu0 0.0
    %993 = vmatpush1.msra.mxu0 %v237
    %994 = vmatprep.subr.mxu0 0.0
    %995 = vmatpush1.msra.mxu0 %v236
    %996 = vmatprep.subr.mxu0 0.0
    %997 = vmatpush1.msra.mxu0 %v235
    %998 = vmatprep.subr.mxu0 0.0
    %999 = vmatpush1.msra.mxu0 %v234
    %1000 = vmatprep.subr.mxu0 0.0
    %1001 = vmatpush1.msra.mxu0 %v233
    %1002 = vmatprep.subr.mxu0 0.0
    %1003 = vmatpush1.msra.mxu0 %v232
    %1004 = vmatprep.subr.mxu0 0.0
    %1005 = vmatpush1.msra.mxu0 %v231
    %1006 = vmatprep.subr.mxu0 0.0
    %1007 = vmatpush2.msra.mxu0 0.0
    %1008 = vmatprep.subr.mxu0 0.0
    %1009 = vmatpush2.msra.mxu0 0.0
    %1010 = vmatprep.subr.mxu0 0.0
    %1011 = vmatpush2.msra.mxu0 0.0
    %1012 = vmatprep.subr.mxu0 0.0
    %1013 = vmatpush2.msra.mxu0 0.0
    %1014 = vmatprep.subr.mxu0 0.0
    %1015 = vmatpush2.msra.mxu0 0.0
    %1016 = vmatprep.subr.mxu0 0.0
    %1017 = vmatpush2.msra.mxu0 0.0
    %1018 = vmatprep.subr.mxu0 0.0
    %1019 = vmatpush2.msra.mxu0 0.0
    %1020 = vmatprep.subr.mxu0 0.0
    %1021 = vmatpush2.msra.mxu0 0.0
    %1022 = vmatprep.subr.mxu0 0.0
    %1023 = vmatpush2.msra.mxu0 0.0
    %1024 = vmatprep.subr.mxu0 0.0
    %1025 = vmatpush2.msra.mxu0 0.0
    %1026 = vmatprep.subr.mxu0 0.0
    %1027 = vmatpush2.msra.mxu0 0.0
    %1028 = vmatprep.subr.mxu0 0.0
    %1029 = vmatpush2.msra.mxu0 0.0
    %1030 = vmatprep.subr.mxu0 0.0
    %1031 = vmatpush2.msra.mxu0 0.0
    %1032 = vmatprep.subr.mxu0 0.0
    %1033 = vmatpush2.msra.mxu0 0.0
    %1034 = vmatprep.subr.mxu0 0.0
    %1035 = vmatpush2.msra.mxu0 0.0
    %1036 = vmatprep.subr.mxu0 0.0
    %1037 = vmatpush2.msra.mxu0 0.0
    %1038 = vmatprep.mubr.f32.mxu0 0.0
    %1039 = vmatmul.mubr.f32.gmra.mxu0 %v973
    %v1040 = vpop.f32.mrf.mxu0
    %v1041 = vadd.f32 0.0, %v1040
    %v1042 = vpop.f32.mrf.mxu0
    %1043 = vdwg.mxu0
    %v1044 = vrcp.pop %v1041
    %v1045 = vmul.f32 1.0, %v1044
    %1047 = vset.pattern.permute.xlu0 0
    %1048 = vperm.xlu0 %1047, %v1045
    %v1049 = vpop.permute.xlu0 %1048
    %v1051 = vmul.f32 %v973, %v1049
    %1052 = vst [vmem:[#allocation5 + $0x18] sm:$0xff] %v1051
    %1053 = vrot.lane.b32.xlu0 %v1045, 1
    %v1054 = vpop.permute.xlu0 %1053
    %v1056 = vmul.f32 %v1041, %v1054
    %1058 = vrot.lane.b32.xlu0 %v1056, 2
    %v1059 = vpop.permute.xlu0 %1058
    %vm1061 = vcmask 31768
    %1062 = vst.msk [vmem:[%s9] sm:$0xff] %vm1061, %v1059
    // Predicated region
    $region38: #{tpu_custom_call.1} parent=1 // pred_check
      _
    $region39: #{tpu_custom_call.1} parent=1 // pred_check_branch
      %1064 = sbr.rel (0) target = $region41
    $region40: #{tpu_custom_call.1} parent=1 // pred_region
      %s1066 = ssub.s32 512, 512
      %1067 = vsyncadd [#allocation4], %s1066
      %s1069 = sshll.u32 [#allocation5], 4
      %s1070 = int_to_ptr.vmem [resolvable:$true] %s1069
      %1072 = dma.vmem_to_hbm [thread:$0]  %s1070, 512, %s8, [#allocation4]
    $region41: #{tpu_custom_call.1} parent=1 // pred_fallthru
      _
    // Predicated region
    $region42: #{tpu_custom_call.1} parent=1 // pred_check
      _
    $region43: #{tpu_custom_call.1} parent=1 // pred_check_branch
      %1074 = sbr.rel (0) target = $region45
    $region44: #{tpu_custom_call.1} parent=1 // pred_region
      _
    $region45: #{tpu_custom_call.1} parent=1 // pred_fallthru
      _
    // Predicated region
    $region46: #{tpu_custom_call.1} parent=1 // pred_check
      _
    $region47: #{tpu_custom_call.1} parent=1 // pred_check_branch
      %1076 = sbr.rel (0) target = $region49
    $region48: #{tpu_custom_call.1} parent=1 // pred_region
      %1077 = dma.done [#allocation4], 512
    $region49: #{tpu_custom_call.1} parent=1 // pred_fallthru
      _
    // Predicated region
    $region50: #{tpu_custom_call.1} parent=1 // pred_check
      _
    $region51: #{tpu_custom_call.1} parent=1 // pred_check_branch
      %1079 = sbr.rel (0) target = $region53
    $region52: #{tpu_custom_call.1} parent=1 // pred_region
      _
    $region53: #{tpu_custom_call.1} parent=1 // pred_fallthru
      _
    %1080 = vsyncpa [#allocation3], 1
    %1081 = vsyncpa [#allocation4], 1

</llo_original>
